<compile_context>
chip_gen: v7x
topology: tpu7x:2x2x1
jax: 0.10.0
libtpu: 0.0.40
codegen_flags: <defaults>
</compile_context>

<pallas_src>
import functools

import jax
import jax.numpy as jnp
from jax import lax
from jax.experimental import pallas as pl
from jax.experimental.pallas import tpu as pltpu


# ---------------------------------------------------------------------------
# Generation-aware sizing
# ---------------------------------------------------------------------------

def _vmem_capacity_bytes() -> int:
    """Physical VMEM per TensorCore (128 MiB v5e/v6e, 64 MiB v7x)."""
    try:
        info = pltpu.get_tpu_info()
        cap = getattr(info, "vmem_capacity_bytes", None)
        if cap:
            return int(cap)
    except Exception:
        pass
    return 64 * 1024 * 1024          # conservative default (v7x per-core)


def _sizing():
    """(scoped vmem limit, pass-1 block budget, pass-2 block budget)."""
    cap = _vmem_capacity_bytes()
    # 48 MiB scoped limit on v7x (64 MiB physical), 96 MiB on v5e/v6e (128 MiB).
    vmem_limit = min(cap * 3 // 4, 96 * 1024 * 1024)
    usable = vmem_limit * 4 // 5                          # headroom for scratch
    budget_reduce = min(usable // 2, 16 * 1024 * 1024)    # pass 1: 2x x-blocks
    budget_stream = min(usable // 4, 16 * 1024 * 1024)    # pass 2: 2x in + 2x out
    return vmem_limit, budget_reduce, budget_stream


def _choose_tiles(b, c, hw, budget_bytes, itemsize=4):
    """Pick (batch block tb, lane-dense spatial tile t) under the block budget.

    Spatial tile first (long contiguous DMAs), then grow the batch block.
    t is a multiple of 128 (unmasked lane-dense stores) unless it covers all
    of H*W.  Floors at (1, C, 128) even if that exceeds the budget.
    """
    per_lane = c * itemsize                      # bytes of one spatial column (tb=1)
    t_cap = budget_bytes // max(per_lane, 1)
    t = max(128, (t_cap // 128) * 128)
    if t >= hw:
        t = hw                                   # full-extent tile (any H*W allowed)
    tb = max(1, min(b, budget_bytes // max(per_lane * t, 1)))
    return tb, t


# ---------------------------------------------------------------------------
# Kernels
# ---------------------------------------------------------------------------

def _fused_kernel(x_ref, w1_ref, b1_ref, w2_ref, o_ref):
    """Single pass: global max -> conv1x1 -> ReLU -> conv1x1 -> residual add."""
    x = x_ref[...]                                            # (B, C, HW)
    m = jnp.max(x, axis=-1)                                   # (B, C)
    h = jnp.dot(m, w1_ref[...], preferred_element_type=jnp.float32)
    h = jnp.maximum(h + b1_ref[...], 0.0)                     # bias + ReLU
    y = jnp.dot(h, w2_ref[...], preferred_element_type=jnp.float32)
    o_ref[...] = x + y[..., None]                             # broadcast add


def _max_partials_kernel(x_ref, p_ref, *, t, hw, mask_spatial):
    """Running max over spatial tiles into a per-(split, batch-block) partial.

    x_ref : (tb, C, t) spatial tile
    p_ref : (tb, C, 1) resident partial (leading split dim squeezed)
    """
    i = pl.program_id(2)
    x = x_ref[...]
    if mask_spatial:
        # Ragged H*W: mask the lanes past the end of the map with -inf.
        s = pl.program_id(0)
        start = (s * pl.num_programs(2) + i) * t
        lane = lax.broadcasted_iota(jnp.int32, x.shape, 2)
        x = jnp.where(start + lane < hw, x, -jnp.inf)
    tile_max = jnp.max(x, axis=-1, keepdims=True)             # (tb, C, 1)

    @pl.when(i == 0)
    def _init():
        p_ref[...] = tile_max

    @pl.when(i > 0)
    def _update():
        p_ref[...] = jnp.maximum(p_ref[...], tile_max)


def _residual_kernel(x_ref, y_ref, o_ref):
    """o = x + y, broadcast over the spatial (lane) axis."""
    o_ref[...] = x_ref[...] + y_ref[...]


# ---------------------------------------------------------------------------
# Wrapper
# ---------------------------------------------------------------------------

def pool_apply(x, w1, b1, w2, *, tile_hw=None, force_two_pass=False):
    """Pool.forward:  x + Conv1x1(ReLU(Conv1x1(GlobalMaxPool(x)))).

    x : (B, C, H, W) float32 (NCHW)
    w1: (C, 4C)  == pt_conv1.weight[:, :, 0, 0].T
    b1: (1, 4C)  == pt_conv1.bias[None, :]
    w2: (4C, C)  == pt_conv2.weight[:, :, 0, 0].T
    """
    B, C, H, W = x.shape
    HW = H * W
    xf = x.reshape(B, C, HW)                      # free reshape; HW on lanes
    itemsize = 4
    x_bytes = B * C * HW * itemsize
    w_bytes = (w1.size + b1.size + w2.size) * itemsize

    vmem_limit, budget_reduce, budget_stream = _sizing()

    # ---- fused single-pass path (x fits in VMEM): ~2x HBM traffic ----------
    fused_working_set = (2 * x_bytes + w_bytes) * 9 // 8 + (4 << 20)
    if (not force_two_pass) and fused_working_set <= vmem_limit:
        out = pl.pallas_call(
            _fused_kernel,
            out_shape=jax.ShapeDtypeStruct((B, C, HW), jnp.float32),
            compiler_params=pltpu.CompilerParams(vmem_limit_bytes=vmem_limit),
        )(xf, w1, b1, w2)
        return out.reshape(B, C, H, W)

    # ---- two-pass streaming fallback ---------------------------------------
    # Pass 1: tiled running max -> per-split partials.
    mask_probe = tile_hw is not None and tile_hw < HW and (HW % tile_hw) != 0
    if tile_hw is not None:
        tb1, t1 = B, min(tile_hw, HW)
    else:
        # Masked tiles need extra VMEM headroom for the iota/select temporaries.
        b1_budget = budget_reduce // 2 if (HW % 128) != 0 else budget_reduce
        tb1, t1 = _choose_tiles(B, C, HW, b1_budget, itemsize)
    assert t1 == HW or t1 % 128 == 0, (t1, HW)
    n_b1 = pl.cdiv(B, tb1)
    n_t1 = pl.cdiv(HW, t1)
    mask1 = (HW % t1) != 0 if t1 < HW else False
    del mask_probe
    # v7x: split the spatial reduction across both TensorCores.
    n_split = 2 if (n_t1 >= 2 and n_t1 % 2 == 0) else 1
    n_t_per = n_t1 // n_split

    partials = pl.pallas_call(
        functools.partial(_max_partials_kernel, t=t1, hw=HW, mask_spatial=mask1),
        out_shape=jax.ShapeDtypeStruct((n_split, B, C, 1), jnp.float32),
        grid=(n_split, n_b1, n_t_per),
        in_specs=[
            pl.BlockSpec((tb1, C, t1),
                         lambda s, b, i, _nt=n_t_per: (b, 0, s * _nt + i)),
        ],
        out_specs=pl.BlockSpec((None, tb1, C, 1), lambda s, b, i: (s, b, 0, 0)),
        compiler_params=pltpu.CompilerParams(
            dimension_semantics=("parallel", "parallel", "arbitrary"),
            vmem_limit_bytes=vmem_limit),
    )(xf)

    # Epilogue (tiny, plain XLA): combine per-split partials + 1x1-conv MLP.
    m = jnp.max(partials[..., 0], axis=0)                     # (B, C)
    h = jnp.maximum(jnp.dot(m, w1) + b1, 0.0)
    y = jnp.dot(h, w2)[..., None]                             # (B, C, 1)

    # Pass 2: broadcast residual add over (batch blocks) x (spatial tiles).
    if tile_hw is not None:
        tb2, t2 = B, min(tile_hw, HW)
    else:
        tb2, t2 = _choose_tiles(B, C, HW, budget_stream, itemsize)
    n_b2 = pl.cdiv(B, tb2)
    n_t2 = pl.cdiv(HW, t2)

    out = pl.pallas_call(
        _residual_kernel,
        out_shape=jax.ShapeDtypeStruct((B, C, HW), jnp.float32),
        grid=(n_b2, n_t2),
        in_specs=[
            pl.BlockSpec((tb2, C, t2), lambda b, i: (b, 0, i)),
            pl.BlockSpec((tb2, C, 1), lambda b, i: (b, 0, 0)),
        ],
        out_specs=pl.BlockSpec((tb2, C, t2), lambda b, i: (b, 0, i)),
        compiler_params=pltpu.CompilerParams(
            dimension_semantics=("parallel", "parallel"),
            vmem_limit_bytes=vmem_limit),
    )(xf, y)
    return out.reshape(B, C, H, W)


def pool_reference(x, w1, b1, w2):
    """Pure-JAX reference of the PyTorch Pool module."""
    m = jnp.max(x, axis=(2, 3))                        # AdaptiveMaxPool2d(1)
    h = jnp.maximum(jnp.dot(m, w1) + b1, 0.0)          # Conv2d(C,4C,1) + ReLU
    y = jnp.dot(h, w2)                                 # Conv2d(4C,C,1,bias=False)
    return x + y[:, :, None, None]


if __name__ == "__main__":
    B, C, H, W = 2, 64, 16, 16
    key = jax.random.PRNGKey(0)
    kx, kw1, kb1, kw2 = jax.random.split(key, 4)
    x = jax.random.normal(kx, (B, C, H, W), jnp.float32)
    w1 = jax.random.normal(kw1, (C, 4 * C), jnp.float32) / (C ** 0.5)
    b1 = jax.random.normal(kb1, (1, 4 * C), jnp.float32) * 0.1
    w2 = jax.random.normal(kw2, (4 * C, C), jnp.float32) / ((4 * C) ** 0.5)

    ref = pool_reference(x, w1, b1, w2)

    # 1) Fused single-pass path (x fits easily in VMEM at this size).
    out = jax.block_until_ready(jax.jit(pool_apply)(x, w1, b1, w2))
    assert out.shape == (B, C, H, W), out.shape
    assert bool(jnp.all(jnp.isfinite(out)))
    assert jnp.allclose(out, ref, rtol=1e-5, atol=1e-5), float(
        jnp.max(jnp.abs(out - ref)))

    # 2) Forced two-pass streaming path: 2 lane-dense spatial tiles, even
    #    core-split reduction, resident partials, broadcast residual add.
    two_pass = jax.jit(functools.partial(pool_apply, tile_hw=128,
                                         force_two_pass=True))
    out2 = jax.block_until_ready(two_pass(x, w1, b1, w2))
    assert jnp.allclose(out2, ref, rtol=1e-5, atol=1e-5), float(
        jnp.max(jnp.abs(out2 - ref)))

    # 3) Ragged spatial size (H*W = 400, not a multiple of 128) through the
    #    streaming path: masked max tile + masked final-block residual store.
    xr = jax.random.normal(kx, (B, C, 20, 20), jnp.float32)
    refr = pool_reference(xr, w1, b1, w2)
    outr = jax.block_until_ready(two_pass(xr, w1, b1, w2))
    assert jnp.allclose(outr, refr, rtol=1e-5, atol=1e-5), float(
        jnp.max(jnp.abs(outr - refr)))

    print("KERNEL_OK")
</pallas_src>

<mosaic_0001>
module attributes {stable_mosaic.version = 11 : i64} {
  func.func @_fused_kernel(%arg0: memref<2x64x256xf32, #tpu.memory_space<vmem>>, %arg1: memref<64x256xf32, #tpu.memory_space<vmem>>, %arg2: memref<1x256xf32, #tpu.memory_space<vmem>>, %arg3: memref<256x64xf32, #tpu.memory_space<vmem>>, %arg4: memref<2x64x256xf32, #tpu.memory_space<vmem>>) attributes {dimension_semantics = [], scalar_prefetch = 0 : i64, scratch_operands = 0 : i64, tpu.core_type = #tpu.core_type<tc>} {
    %c0 = arith.constant 0 : index
    %c0_0 = arith.constant 0 : index
    %c0_1 = arith.constant 0 : index
    %0 = vector.load %arg0[%c0, %c0_0, %c0_1] : memref<2x64x256xf32, #tpu.memory_space<vmem>>, vector<2x64x256xf32>
    %cst = arith.constant dense<0xFF800000> : vector<2x64xf32>
    %1 = vector.multi_reduction <maximumf>, %0, %cst [2] : vector<2x64x256xf32> to vector<2x64xf32>
    %c0_2 = arith.constant 0 : index
    %c0_3 = arith.constant 0 : index
    %2 = vector.load %arg1[%c0_2, %c0_3] : memref<64x256xf32, #tpu.memory_space<vmem>>, vector<64x256xf32>
    %cst_4 = arith.constant dense<0.000000e+00> : vector<2x256xf32>
    %3 = tpu.matmul %1, %2, %cst_4 {dimension_numbers = #tpu.dot_dimension_numbers<[1], [0], [0], [1], [0, 0, 1, 1], [], []>} : vector<2x64xf32>, vector<64x256xf32>, vector<2x256xf32> -> vector<2x256xf32>
    %c0_5 = arith.constant 0 : index
    %c0_6 = arith.constant 0 : index
    %4 = vector.load %arg2[%c0_5, %c0_6] : memref<1x256xf32, #tpu.memory_space<vmem>>, vector<1x256xf32>
    %5 = vector.broadcast %4 : vector<1x256xf32> to vector<2x256xf32>
    %6 = arith.addf %3, %5 : vector<2x256xf32>
    %cst_7 = arith.constant 0.000000e+00 : f32
    %7 = vector.broadcast %cst_7 : f32 to vector<2x256xf32>
    %8 = arith.maximumf %6, %7 : vector<2x256xf32>
    %c0_8 = arith.constant 0 : index
    %c0_9 = arith.constant 0 : index
    %9 = vector.load %arg3[%c0_8, %c0_9] : memref<256x64xf32, #tpu.memory_space<vmem>>, vector<256x64xf32>
    %cst_10 = arith.constant dense<0.000000e+00> : vector<2x64xf32>
    %10 = tpu.matmul %8, %9, %cst_10 {dimension_numbers = #tpu.dot_dimension_numbers<[1], [0], [0], [1], [0, 0, 1, 1], [], []>} : vector<2x256xf32>, vector<256x64xf32>, vector<2x64xf32> -> vector<2x64xf32>
    %11 = vector.shape_cast %10 : vector<2x64xf32> to vector<2x64x1xf32>
    %12 = vector.broadcast %11 : vector<2x64x1xf32> to vector<2x64x256xf32>
    %13 = arith.addf %0, %12 : vector<2x64x256xf32>
    %c0_11 = arith.constant 0 : index
    %c0_12 = arith.constant 0 : index
    %c0_13 = arith.constant 0 : index
    %14 = vector.load %arg4[%c0_11, %c0_12, %c0_13] : memref<2x64x256xf32, #tpu.memory_space<vmem>>, vector<2x64x256xf32>
    tpu.vector_store %arg4[%c0_11, %c0_12, %c0_13], %13 {strides = array<i32>} : memref<2x64x256xf32, #tpu.memory_space<vmem>>, vector<2x64x256xf32>,
    return
  }
}

</mosaic_0001>

<llo_original>
// kernel: pool_apply.1
$region0: #{pool_apply.1}
  #allocation0 [shape = 'u32[]', space=smem, size = 0x4, offset = 0x4, fixed_abs, tag = 'smem constant byte address 0x4 - core index']
  #allocation1 [shape = 'u32[144,128]{1,0:T(1,128)}', space=vmem, size = 0x12000, scoped, tag = 'internal scratch']
  %s0 = inlined_call_operand.vmem [shape: f32[2,64,256], index: 0, kind: input, shape index: {}]
  %s1 = inlined_call_operand.vmem [shape: f32[64,256], index: 1, kind: input, shape index: {}]
  %s2 = inlined_call_operand.vmem [shape: f32[1,256], index: 2, kind: input, shape index: {}]
  %s3 = inlined_call_operand.vmem [shape: f32[256,64], index: 3, kind: input, shape index: {}]
  %s4 = inlined_call_operand.vmem [shape: f32[2,64,256], index: 4, kind: output, shape index: {}]
  %s5 = sld [smem:[#allocation0]]
  $region26: #{pool_apply.1} parent=0
    _
  %s7 = ssub.s32 1, %s5
  %s8 = scalar_select 0, %s7, %s5
  // Predicated region
  $region2: #{pool_apply.1} parent=0 // pred_check
    _
  $region3: #{pool_apply.1} parent=0 // pred_check_branch
    %10 = sbr.rel (0) target = $region5
  $region4: #{pool_apply.1} parent=0 // pred_region
    _
  $region5: #{pool_apply.1} parent=0 // pred_fallthru
    _
  // Predicated region
  $region6: #{pool_apply.1} parent=0 // pred_check
    _
  $region7: #{pool_apply.1} parent=0 // pred_check_branch
    %12 = sbr.rel (0) target = $region9
  $region8: #{pool_apply.1} parent=0 // pred_region
    _
  $region9: #{pool_apply.1} parent=0 // pred_fallthru
    _
  // Predicated region
  $region10: #{pool_apply.1} parent=0 // pred_check
    _
  $region11: #{pool_apply.1} parent=0 // pred_check_branch
    %14 = sbr.rel (0) target = $region13
  $region12: #{pool_apply.1} parent=0 // pred_region
    _
  $region13: #{pool_apply.1} parent=0 // pred_fallthru
    _
  // Predicated region
  $region14: #{pool_apply.1} parent=0 // pred_check
    _
  $region15: #{pool_apply.1} parent=0 // pred_check_branch
    %16 = sbr.rel (0) target = $region17
  $region16: #{pool_apply.1} parent=0 // pred_region
    _
  $region17: #{pool_apply.1} parent=0 // pred_fallthru
    _
  %v17 = vld [vmem:[%s0] sm:$0xff]
  %v18 = vld [vmem:[%s0 + $0x8] sm:$0xff]
  %v19 = vld [vmem:[%s0 + $0x10] sm:$0xff]
  %v20 = vld [vmem:[%s0 + $0x18] sm:$0xff]
  %v21 = vld [vmem:[%s0 + $0x20] sm:$0xff]
  %v22 = vld [vmem:[%s0 + $0x28] sm:$0xff]
  %v23 = vld [vmem:[%s0 + $0x30] sm:$0xff]
  %v24 = vld [vmem:[%s0 + $0x38] sm:$0xff]
  %v25 = vld [vmem:[%s0 + $0x40] sm:$0xff]
  %v26 = vld [vmem:[%s0 + $0x48] sm:$0xff]
  %v27 = vld [vmem:[%s0 + $0x50] sm:$0xff]
  %v28 = vld [vmem:[%s0 + $0x58] sm:$0xff]
  %v29 = vld [vmem:[%s0 + $0x60] sm:$0xff]
  %v30 = vld [vmem:[%s0 + $0x68] sm:$0xff]
  %v31 = vld [vmem:[%s0 + $0x70] sm:$0xff]
  %v32 = vld [vmem:[%s0 + $0x78] sm:$0xff]
  %v33 = vld [vmem:[%s0 + $0x80] sm:$0xff]
  %v34 = vld [vmem:[%s0 + $0x88] sm:$0xff]
  %v35 = vld [vmem:[%s0 + $0x90] sm:$0xff]
  %v36 = vld [vmem:[%s0 + $0x98] sm:$0xff]
  %v37 = vld [vmem:[%s0 + $0xa0] sm:$0xff]
  %v38 = vld [vmem:[%s0 + $0xa8] sm:$0xff]
  %v39 = vld [vmem:[%s0 + $0xb0] sm:$0xff]
  %v40 = vld [vmem:[%s0 + $0xb8] sm:$0xff]
  %v41 = vld [vmem:[%s0 + $0xc0] sm:$0xff]
  %v42 = vld [vmem:[%s0 + $0xc8] sm:$0xff]
  %v43 = vld [vmem:[%s0 + $0xd0] sm:$0xff]
  %v44 = vld [vmem:[%s0 + $0xd8] sm:$0xff]
  %v45 = vld [vmem:[%s0 + $0xe0] sm:$0xff]
  %v46 = vld [vmem:[%s0 + $0xe8] sm:$0xff]
  %v47 = vld [vmem:[%s0 + $0xf0] sm:$0xff]
  %v48 = vld [vmem:[%s0 + $0xf8] sm:$0xff]
  %v49 = vmax.f32 %v17, %v18
  %50 = vmax.xlane.f32.xlu0 %v49
  %v51 = vpop.xlane.xlu0 %50
  %v52 = vmax.f32 %v19, %v20
  %53 = vmax.xlane.f32.xlu0 %v52
  %v54 = vpop.xlane.xlu0 %53
  %v55 = vmax.f32 %v21, %v22
  %56 = vmax.xlane.f32.xlu0 %v55
  %v57 = vpop.xlane.xlu0 %56
  %v58 = vmax.f32 %v23, %v24
  %59 = vmax.xlane.f32.xlu0 %v58
  %v60 = vpop.xlane.xlu0 %59
  %v61 = vmax.f32 %v25, %v26
  %62 = vmax.xlane.f32.xlu0 %v61
  %v63 = vpop.xlane.xlu0 %62
  %v64 = vmax.f32 %v27, %v28
  %65 = vmax.xlane.f32.xlu0 %v64
  %v66 = vpop.xlane.xlu0 %65
  %v67 = vmax.f32 %v29, %v30
  %68 = vmax.xlane.f32.xlu0 %v67
  %v69 = vpop.xlane.xlu0 %68
  %v70 = vmax.f32 %v31, %v32
  %71 = vmax.xlane.f32.xlu0 %v70
  %v72 = vpop.xlane.xlu0 %71
  %v73 = vmax.f32 %v33, %v34
  %74 = vmax.xlane.f32.xlu0 %v73
  %v75 = vpop.xlane.xlu0 %74
  %v76 = vmax.f32 %v35, %v36
  %77 = vmax.xlane.f32.xlu0 %v76
  %v78 = vpop.xlane.xlu0 %77
  %v79 = vmax.f32 %v37, %v38
  %80 = vmax.xlane.f32.xlu0 %v79
  %v81 = vpop.xlane.xlu0 %80
  %v82 = vmax.f32 %v39, %v40
  %83 = vmax.xlane.f32.xlu0 %v82
  %v84 = vpop.xlane.xlu0 %83
  %v85 = vmax.f32 %v41, %v42
  %86 = vmax.xlane.f32.xlu0 %v85
  %v87 = vpop.xlane.xlu0 %86
  %v88 = vmax.f32 %v43, %v44
  %89 = vmax.xlane.f32.xlu0 %v88
  %v90 = vpop.xlane.xlu0 %89
  %v91 = vmax.f32 %v45, %v46
  %92 = vmax.xlane.f32.xlu0 %v91
  %v93 = vpop.xlane.xlu0 %92
  %v94 = vmax.f32 %v47, %v48
  %95 = vmax.xlane.f32.xlu0 %v94
  %v96 = vpop.xlane.xlu0 %95
  %v97 = vld [vmem:[%s1] sm:$0xff]
  %v98 = vld [vmem:[%s1 + $0x8] sm:$0xff]
  %v99 = vld [vmem:[%s1 + $0x10] sm:$0xff]
  %v100 = vld [vmem:[%s1 + $0x18] sm:$0xff]
  %v101 = vld [vmem:[%s1 + $0x20] sm:$0xff]
  %v102 = vld [vmem:[%s1 + $0x28] sm:$0xff]
  %v103 = vld [vmem:[%s1 + $0x30] sm:$0xff]
  %v104 = vld [vmem:[%s1 + $0x38] sm:$0xff]
  %v105 = vld [vmem:[%s1 + $0x40] sm:$0xff]
  %v106 = vld [vmem:[%s1 + $0x48] sm:$0xff]
  %v107 = vld [vmem:[%s1 + $0x50] sm:$0xff]
  %v108 = vld [vmem:[%s1 + $0x58] sm:$0xff]
  %v109 = vld [vmem:[%s1 + $0x60] sm:$0xff]
  %v110 = vld [vmem:[%s1 + $0x68] sm:$0xff]
  %v111 = vld [vmem:[%s1 + $0x70] sm:$0xff]
  %v112 = vld [vmem:[%s1 + $0x78] sm:$0xff]
  %v113 = vld [vmem:[%s2] sm:$0x3]
  %v115 = vlaneseq
  %v116 = vshrl.u32 %v115, 7
  %v117 = vsub.s32 0, %v116
  %v118 = vrot.slane %v113, %v117
  %v119 = vlaneseq
  %v120 = vshrl.u32 %v119, 7
  %v121 = vsub.s32 1, %v120
  %v122 = vrot.slane %v113, %v121
  %v141 = vlaneseq
  %v142 = vand.u32 %v141, 127
  %v143 = vlaneseq
  %v144 = vshrl.u32 %v143, 7
  %v145 = vsub.s32 %v142, %v144
  %v146 = vrot.slane %v51, %v145
  %v147 = vadd.s32 %v142, 4294967288
  %v148 = vlaneseq
  %v149 = vshrl.u32 %v148, 7
  %v150 = vsub.s32 %v147, %v149
  %v151 = vrot.slane %v54, %v150
  %vm152 = vcmask 130112
  %v153 = vsel %vm152, %v151, %v146
  %v154 = vadd.s32 %v142, 4294967280
  %v155 = vlaneseq
  %v156 = vshrl.u32 %v155, 7
  %v157 = vsub.s32 %v154, %v156
  %v158 = vrot.slane %v57, %v157
  %vm159 = vcmask 195712
  %v160 = vsel %vm159, %v158, %v153
  %v161 = vadd.s32 %v142, 4294967272
  %v162 = vlaneseq
  %v163 = vshrl.u32 %v162, 7
  %v164 = vsub.s32 %v161, %v163
  %v165 = vrot.slane %v60, %v164
  %vm166 = vcmask 261312
  %v167 = vsel %vm166, %v165, %v160
  %v168 = vadd.s32 %v142, 4294967264
  %v169 = vlaneseq
  %v170 = vshrl.u32 %v169, 7
  %v171 = vsub.s32 %v168, %v170
  %v172 = vrot.slane %v63, %v171
  %vm173 = vcmask 326912
  %v174 = vsel %vm173, %v172, %v167
  %v175 = vadd.s32 %v142, 4294967256
  %v176 = vlaneseq
  %v177 = vshrl.u32 %v176, 7
  %v178 = vsub.s32 %v175, %v177
  %v179 = vrot.slane %v66, %v178
  %vm180 = vcmask 392512
  %v181 = vsel %vm180, %v179, %v174
  %v182 = vadd.s32 %v142, 4294967248
  %v183 = vlaneseq
  %v184 = vshrl.u32 %v183, 7
  %v185 = vsub.s32 %v182, %v184
  %v186 = vrot.slane %v69, %v185
  %vm187 = vcmask 458112
  %v188 = vsel %vm187, %v186, %v181
  %v189 = vadd.s32 %v142, 4294967240
  %v190 = vlaneseq
  %v191 = vshrl.u32 %v190, 7
  %v192 = vsub.s32 %v189, %v191
  %v193 = vrot.slane %v72, %v192
  %vm194 = vcmask 523712
  %v195 = vsel %vm194, %v193, %v188
  %v196 = vlaneseq
  %v197 = vshrl.u32 %v196, 7
  %v198 = vsub.s32 %v142, %v197
  %v199 = vrot.slane %v75, %v198
  %v200 = vlaneseq
  %v201 = vshrl.u32 %v200, 7
  %v202 = vsub.s32 %v147, %v201
  %v203 = vrot.slane %v78, %v202
  %v204 = vsel %vm152, %v203, %v199
  %v205 = vlaneseq
  %v206 = vshrl.u32 %v205, 7
  %v207 = vsub.s32 %v154, %v206
  %v208 = vrot.slane %v81, %v207
  %v209 = vsel %vm159, %v208, %v204
  %v210 = vlaneseq
  %v211 = vshrl.u32 %v210, 7
  %v212 = vsub.s32 %v161, %v211
  %v213 = vrot.slane %v84, %v212
  %v214 = vsel %vm166, %v213, %v209
  %v215 = vlaneseq
  %v216 = vshrl.u32 %v215, 7
  %v217 = vsub.s32 %v168, %v216
  %v218 = vrot.slane %v87, %v217
  %v219 = vsel %vm173, %v218, %v214
  %v220 = vlaneseq
  %v221 = vshrl.u32 %v220, 7
  %v222 = vsub.s32 %v175, %v221
  %v223 = vrot.slane %v90, %v222
  %v224 = vsel %vm180, %v223, %v219
  %v225 = vlaneseq
  %v226 = vshrl.u32 %v225, 7
  %v227 = vsub.s32 %v182, %v226
  %v228 = vrot.slane %v93, %v227
  %v229 = vsel %vm187, %v228, %v224
  %v230 = vlaneseq
  %v231 = vshrl.u32 %v230, 7
  %v232 = vsub.s32 %v189, %v231
  %v233 = vrot.slane %v96, %v232
  %v234 = vsel %vm194, %v233, %v229
  %vm235 = vcmask 1041409
  %v236 = vsel %vm235, %v234, %v195
  %vm237 = vcmask 523264
  %v238 = vsel %vm237, %v236, 0
  %240 = vmatprep.subr.mxu0 %v98
  %241 = vmatpush1.msra.mxu0 %v97
  %242 = vmatprep.subr.mxu0 %v100
  %243 = vmatpush1.msra.mxu0 %v99
  %244 = vmatprep.subr.mxu0 %v102
  %245 = vmatpush1.msra.mxu0 %v101
  %246 = vmatprep.subr.mxu0 %v104
  %247 = vmatpush1.msra.mxu0 %v103
  %248 = vmatprep.subr.mxu0 %v106
  %249 = vmatpush1.msra.mxu0 %v105
  %250 = vmatprep.subr.mxu0 %v108
  %251 = vmatpush1.msra.mxu0 %v107
  %252 = vmatprep.subr.mxu0 %v110
  %253 = vmatpush1.msra.mxu0 %v109
  %254 = vmatprep.subr.mxu0 %v112
  %255 = vmatpush1.msra.mxu0 %v111
  %256 = vmatprep.subr.mxu0 0.0
  %257 = vmatpush1.msra.mxu0 0.0
  %258 = vmatprep.subr.mxu0 0.0
  %259 = vmatpush1.msra.mxu0 0.0
  %260 = vmatprep.subr.mxu0 0.0
  %261 = vmatpush1.msra.mxu0 0.0
  %262 = vmatprep.subr.mxu0 0.0
  %263 = vmatpush1.msra.mxu0 0.0
  %264 = vmatprep.subr.mxu0 0.0
  %265 = vmatpush1.msra.mxu0 0.0
  %266 = vmatprep.subr.mxu0 0.0
  %267 = vmatpush1.msra.mxu0 0.0
  %268 = vmatprep.subr.mxu0 0.0
  %269 = vmatpush1.msra.mxu0 0.0
  %270 = vmatprep.subr.mxu0 0.0
  %271 = vmatpush1.msra.mxu0 0.0
  %272 = vmatprep.subr.mxu0 0.0
  %273 = vmatpush1.msra.mxu0 0.0
  %274 = vmatprep.subr.mxu0 0.0
  %275 = vmatpush1.msra.mxu0 0.0
  %276 = vmatprep.subr.mxu0 0.0
  %277 = vmatpush1.msra.mxu0 0.0
  %278 = vmatprep.subr.mxu0 0.0
  %279 = vmatpush1.msra.mxu0 0.0
  %280 = vmatprep.subr.mxu0 0.0
  %281 = vmatpush1.msra.mxu0 0.0
  %282 = vmatprep.subr.mxu0 0.0
  %283 = vmatpush1.msra.mxu0 0.0
  %284 = vmatprep.subr.mxu0 0.0
  %285 = vmatpush1.msra.mxu0 0.0
  %286 = vmatprep.subr.mxu0 0.0
  %287 = vmatpush1.msra.mxu0 0.0
  %288 = vmatprep.subr.mxu0 0.0
  %289 = vmatpush1.msra.mxu0 0.0
  %290 = vmatprep.subr.mxu0 0.0
  %291 = vmatpush1.msra.mxu0 0.0
  %292 = vmatprep.subr.mxu0 0.0
  %293 = vmatpush1.msra.mxu0 0.0
  %294 = vmatprep.subr.mxu0 0.0
  %295 = vmatpush1.msra.mxu0 0.0
  %296 = vmatprep.subr.mxu0 0.0
  %297 = vmatpush1.msra.mxu0 0.0
  %298 = vmatprep.subr.mxu0 0.0
  %299 = vmatpush1.msra.mxu0 0.0
  %300 = vmatprep.subr.mxu0 0.0
  %301 = vmatpush1.msra.mxu0 0.0
  %302 = vmatprep.subr.mxu0 0.0
  %303 = vmatpush1.msra.mxu0 0.0
  %304 = vmatprep.mubr.f32.mxu0 0.0
  %305 = vmatmul.mubr.f32.gmra.mrb[0].mxu0 %v238
  %v306 = vpop.f32.mrb[0].mxu0
  %v307 = vadd.f32 %v118, %v306
  %v308 = vpop.f32.mrb[0].mxu0
  %v309 = vadd.f32 %v122, %v308
  %310 = vdwg.mxu0
  %v311 = vmax.f32 %v307, 0.0
  %v312 = vmax.f32 %v309, 0.0
  %v313 = vld [vmem:[%s3] sm:$0xff]
  %v314 = vld [vmem:[%s3 + $0x8] sm:$0xff]
  %v315 = vld [vmem:[%s3 + $0x10] sm:$0xff]
  %v316 = vld [vmem:[%s3 + $0x18] sm:$0xff]
  %v317 = vld [vmem:[%s3 + $0x20] sm:$0xff]
  %v318 = vld [vmem:[%s3 + $0x28] sm:$0xff]
  %v319 = vld [vmem:[%s3 + $0x30] sm:$0xff]
  %v320 = vld [vmem:[%s3 + $0x38] sm:$0xff]
  %v321 = vld [vmem:[%s3 + $0x40] sm:$0xff]
  %v322 = vld [vmem:[%s3 + $0x48] sm:$0xff]
  %v323 = vld [vmem:[%s3 + $0x50] sm:$0xff]
  %v324 = vld [vmem:[%s3 + $0x58] sm:$0xff]
  %v325 = vld [vmem:[%s3 + $0x60] sm:$0xff]
  %v326 = vld [vmem:[%s3 + $0x68] sm:$0xff]
  %v327 = vld [vmem:[%s3 + $0x70] sm:$0xff]
  %v328 = vld [vmem:[%s3 + $0x78] sm:$0xff]
  %v329 = vld [vmem:[%s3 + $0x80] sm:$0xff]
  %v330 = vld [vmem:[%s3 + $0x88] sm:$0xff]
  %v331 = vld [vmem:[%s3 + $0x90] sm:$0xff]
  %v332 = vld [vmem:[%s3 + $0x98] sm:$0xff]
  %v333 = vld [vmem:[%s3 + $0xa0] sm:$0xff]
  %v334 = vld [vmem:[%s3 + $0xa8] sm:$0xff]
  %v335 = vld [vmem:[%s3 + $0xb0] sm:$0xff]
  %v336 = vld [vmem:[%s3 + $0xb8] sm:$0xff]
  %v337 = vld [vmem:[%s3 + $0xc0] sm:$0xff]
  %v338 = vld [vmem:[%s3 + $0xc8] sm:$0xff]
  %v339 = vld [vmem:[%s3 + $0xd0] sm:$0xff]
  %v340 = vld [vmem:[%s3 + $0xd8] sm:$0xff]
  %v341 = vld [vmem:[%s3 + $0xe0] sm:$0xff]
  %v342 = vld [vmem:[%s3 + $0xe8] sm:$0xff]
  %v343 = vld [vmem:[%s3 + $0xf0] sm:$0xff]
  %v344 = vld [vmem:[%s3 + $0xf8] sm:$0xff]
  %345 = vmatprep.subr.mxu0 0.0
  %346 = vmatpush1.msra.mxu0 %v313
  %347 = vmatprep.subr.mxu0 0.0
  %348 = vmatpush1.msra.mxu0 %v314
  %349 = vmatprep.subr.mxu0 0.0
  %350 = vmatpush1.msra.mxu0 %v315
  %351 = vmatprep.subr.mxu0 0.0
  %352 = vmatpush1.msra.mxu0 %v316
  %353 = vmatprep.subr.mxu0 0.0
  %354 = vmatpush1.msra.mxu0 %v317
  %355 = vmatprep.subr.mxu0 0.0
  %356 = vmatpush1.msra.mxu0 %v318
  %357 = vmatprep.subr.mxu0 0.0
  %358 = vmatpush1.msra.mxu0 %v319
  %359 = vmatprep.subr.mxu0 0.0
  %360 = vmatpush1.msra.mxu0 %v320
  %361 = vmatprep.subr.mxu0 0.0
  %362 = vmatpush1.msra.mxu0 %v321
  %363 = vmatprep.subr.mxu0 0.0
  %364 = vmatpush1.msra.mxu0 %v322
  %365 = vmatprep.subr.mxu0 0.0
  %366 = vmatpush1.msra.mxu0 %v323
  %367 = vmatprep.subr.mxu0 0.0
  %368 = vmatpush1.msra.mxu0 %v324
  %369 = vmatprep.subr.mxu0 0.0
  %370 = vmatpush1.msra.mxu0 %v325
  %371 = vmatprep.subr.mxu0 0.0
  %372 = vmatpush1.msra.mxu0 %v326
  %373 = vmatprep.subr.mxu0 0.0
  %374 = vmatpush1.msra.mxu0 %v327
  %375 = vmatprep.subr.mxu0 0.0
  %376 = vmatpush1.msra.mxu0 %v328
  %377 = vmatprep.subr.mxu0 0.0
  %378 = vmatpush1.msra.mxu0 %v329
  %379 = vmatprep.subr.mxu0 0.0
  %380 = vmatpush1.msra.mxu0 %v330
  %381 = vmatprep.subr.mxu0 0.0
  %382 = vmatpush1.msra.mxu0 %v331
  %383 = vmatprep.subr.mxu0 0.0
  %384 = vmatpush1.msra.mxu0 %v332
  %385 = vmatprep.subr.mxu0 0.0
  %386 = vmatpush1.msra.mxu0 %v333
  %387 = vmatprep.subr.mxu0 0.0
  %388 = vmatpush1.msra.mxu0 %v334
  %389 = vmatprep.subr.mxu0 0.0
  %390 = vmatpush1.msra.mxu0 %v335
  %391 = vmatprep.subr.mxu0 0.0
  %392 = vmatpush1.msra.mxu0 %v336
  %393 = vmatprep.subr.mxu0 0.0
  %394 = vmatpush1.msra.mxu0 %v337
  %395 = vmatprep.subr.mxu0 0.0
  %396 = vmatpush1.msra.mxu0 %v338
  %397 = vmatprep.subr.mxu0 0.0
  %398 = vmatpush1.msra.mxu0 %v339
  %399 = vmatprep.subr.mxu0 0.0
  %400 = vmatpush1.msra.mxu0 %v340
  %401 = vmatprep.subr.mxu0 0.0
  %402 = vmatpush1.msra.mxu0 %v341
  %403 = vmatprep.subr.mxu0 0.0
  %404 = vmatpush1.msra.mxu0 %v342
  %405 = vmatprep.subr.mxu0 0.0
  %406 = vmatpush1.msra.mxu0 %v343
  %407 = vmatprep.subr.mxu0 0.0
  %408 = vmatpush1.msra.mxu0 %v344
  %409 = vmatprep.mubr.f32.mxu0 %v312
  %410 = vmatmul.mubr.f32.gmra.mrb[0].mxu0 %v311
  %v411 = vpop.f32.mrb[0].mxu0
  %v412 = vadd.f32 0.0, %v411
  %v413 = vpop.f32.mrb[0].mxu0
  %414 = vdwg.mxu0
  %v415 = vlaneseq
  %v416 = vshrl.u32 %v415, 7
  %v417 = vsub.s32 0, %v416
  %v418 = vrot.slane %v412, %v417
  %420 = vbcast.lane.b32.xlu0 %v418, 256
  %v421 = vpop.permute.xlu0 %420
  %s423 = sor.u32 256, 8
  %424 = vbcast.lane.b32.xlu0 %v418, %s423
  %v425 = vpop.permute.xlu0 %424
  %s427 = sor.u32 256, 16
  %428 = vbcast.lane.b32.xlu0 %v418, %s427
  %v429 = vpop.permute.xlu0 %428
  %s431 = sor.u32 256, 24
  %432 = vbcast.lane.b32.xlu0 %v418, %s431
  %v433 = vpop.permute.xlu0 %432
  %s435 = sor.u32 256, 32
  %436 = vbcast.lane.b32.xlu0 %v418, %s435
  %v437 = vpop.permute.xlu0 %436
  %s439 = sor.u32 256, 40
  %440 = vbcast.lane.b32.xlu0 %v418, %s439
  %v441 = vpop.permute.xlu0 %440
  %s443 = sor.u32 256, 48
  %444 = vbcast.lane.b32.xlu0 %v418, %s443
  %v445 = vpop.permute.xlu0 %444
  %s447 = sor.u32 256, 56
  %448 = vbcast.lane.b32.xlu0 %v418, %s447
  %v449 = vpop.permute.xlu0 %448
  %v450 = vlaneseq
  %v451 = vshrl.u32 %v450, 7
  %v452 = vsub.s32 1, %v451
  %v453 = vrot.slane %v412, %v452
  %455 = vbcast.lane.b32.xlu0 %v453, 256
  %v456 = vpop.permute.xlu0 %455
  %s458 = sor.u32 256, 8
  %459 = vbcast.lane.b32.xlu0 %v453, %s458
  %v460 = vpop.permute.xlu0 %459
  %s462 = sor.u32 256, 16
  %463 = vbcast.lane.b32.xlu0 %v453, %s462
  %v464 = vpop.permute.xlu0 %463
  %s466 = sor.u32 256, 24
  %467 = vbcast.lane.b32.xlu0 %v453, %s466
  %v468 = vpop.permute.xlu0 %467
  %s470 = sor.u32 256, 32
  %471 = vbcast.lane.b32.xlu0 %v453, %s470
  %v472 = vpop.permute.xlu0 %471
  %s474 = sor.u32 256, 40
  %475 = vbcast.lane.b32.xlu0 %v453, %s474
  %v476 = vpop.permute.xlu0 %475
  %s478 = sor.u32 256, 48
  %479 = vbcast.lane.b32.xlu0 %v453, %s478
  %v480 = vpop.permute.xlu0 %479
  %s482 = sor.u32 256, 56
  %483 = vbcast.lane.b32.xlu0 %v453, %s482
  %v484 = vpop.permute.xlu0 %483
  %v485 = vadd.f32 %v17, %v421
  %v486 = vadd.f32 %v18, %v421
  %v487 = vadd.f32 %v19, %v425
  %v488 = vadd.f32 %v20, %v425
  %v489 = vadd.f32 %v21, %v429
  %v490 = vadd.f32 %v22, %v429
  %v491 = vadd.f32 %v23, %v433
  %v492 = vadd.f32 %v24, %v433
  %v493 = vadd.f32 %v25, %v437
  %v494 = vadd.f32 %v26, %v437
  %v495 = vadd.f32 %v27, %v441
  %v496 = vadd.f32 %v28, %v441
  %v497 = vadd.f32 %v29, %v445
  %v498 = vadd.f32 %v30, %v445
  %v499 = vadd.f32 %v31, %v449
  %v500 = vadd.f32 %v32, %v449
  %v501 = vadd.f32 %v33, %v456
  %v502 = vadd.f32 %v34, %v456
  %v503 = vadd.f32 %v35, %v460
  %v504 = vadd.f32 %v36, %v460
  %v505 = vadd.f32 %v37, %v464
  %v506 = vadd.f32 %v38, %v464
  %v507 = vadd.f32 %v39, %v468
  %v508 = vadd.f32 %v40, %v468
  %v509 = vadd.f32 %v41, %v472
  %v510 = vadd.f32 %v42, %v472
  %v511 = vadd.f32 %v43, %v476
  %v512 = vadd.f32 %v44, %v476
  %v513 = vadd.f32 %v45, %v480
  %v514 = vadd.f32 %v46, %v480
  %v515 = vadd.f32 %v47, %v484
  %v516 = vadd.f32 %v48, %v484
  %517 = vst [vmem:[%s4] sm:$0xff] %v485
  %518 = vst [vmem:[%s4 + $0x8] sm:$0xff] %v486
  %519 = vst [vmem:[%s4 + $0x10] sm:$0xff] %v487
  %520 = vst [vmem:[%s4 + $0x18] sm:$0xff] %v488
  %521 = vst [vmem:[%s4 + $0x20] sm:$0xff] %v489
  %522 = vst [vmem:[%s4 + $0x28] sm:$0xff] %v490
  %523 = vst [vmem:[%s4 + $0x30] sm:$0xff] %v491
  %524 = vst [vmem:[%s4 + $0x38] sm:$0xff] %v492
  %525 = vst [vmem:[%s4 + $0x40] sm:$0xff] %v493
  %526 = vst [vmem:[%s4 + $0x48] sm:$0xff] %v494
  %527 = vst [vmem:[%s4 + $0x50] sm:$0xff] %v495
  %528 = vst [vmem:[%s4 + $0x58] sm:$0xff] %v496
  %529 = vst [vmem:[%s4 + $0x60] sm:$0xff] %v497
  %530 = vst [vmem:[%s4 + $0x68] sm:$0xff] %v498
  %531 = vst [vmem:[%s4 + $0x70] sm:$0xff] %v499
  %532 = vst [vmem:[%s4 + $0x78] sm:$0xff] %v500
  %533 = vst [vmem:[%s4 + $0x80] sm:$0xff] %v501
  %534 = vst [vmem:[%s4 + $0x88] sm:$0xff] %v502
  %535 = vst [vmem:[%s4 + $0x90] sm:$0xff] %v503
  %536 = vst [vmem:[%s4 + $0x98] sm:$0xff] %v504
  %537 = vst [vmem:[%s4 + $0xa0] sm:$0xff] %v505
  %538 = vst [vmem:[%s4 + $0xa8] sm:$0xff] %v506
  %539 = vst [vmem:[%s4 + $0xb0] sm:$0xff] %v507
  %540 = vst [vmem:[%s4 + $0xb8] sm:$0xff] %v508
  %541 = vst [vmem:[%s4 + $0xc0] sm:$0xff] %v509
  %542 = vst [vmem:[%s4 + $0xc8] sm:$0xff] %v510
  %543 = vst [vmem:[%s4 + $0xd0] sm:$0xff] %v511
  %544 = vst [vmem:[%s4 + $0xd8] sm:$0xff] %v512
  %545 = vst [vmem:[%s4 + $0xe0] sm:$0xff] %v513
  %546 = vst [vmem:[%s4 + $0xe8] sm:$0xff] %v514
  %547 = vst [vmem:[%s4 + $0xf0] sm:$0xff] %v515
  %548 = vst [vmem:[%s4 + $0xf8] sm:$0xff] %v516
  // Predicated region
  $region18: #{pool_apply.1} parent=0 // pred_check
    _
  $region19: #{pool_apply.1} parent=0 // pred_check_branch
    %550 = sbr.rel (0) target = $region21
  $region20: #{pool_apply.1} parent=0 // pred_region
    _
  $region21: #{pool_apply.1} parent=0 // pred_fallthru
    _
  // Predicated region
  $region22: #{pool_apply.1} parent=0 // pred_check
    _
  $region23: #{pool_apply.1} parent=0 // pred_check_branch
    %552 = sbr.rel (0) target = $region25
  $region24: #{pool_apply.1} parent=0 // pred_region
    _
  $region25: #{pool_apply.1} parent=0 // pred_fallthru
    _

</llo_original>
